<compile_context>
chip_gen: v5e
topology: v5e:2x2
jax: 0.10.0
libtpu: 0.0.40
codegen_flags: <defaults>
</compile_context>

<pallas_src>
import jax
import jax.numpy as jnp
from jax.experimental import pallas as pl
from jax.experimental.pallas import tpu as pltpu


def _make_mlp_kernel(num_inputs: int, num_linear: int):
    """Build the fused-MLP kernel (transposed [features, batch] layout).

    Ref order:
      in_0 .. in_{num_inputs-1}                activations, shape (feat_j, TB)
      W0_0 .. W0_{num_inputs-1}, b0            first layer, W0 split over inputs
      (W1, b1) .. (W_{L-1}, b_{L-1})           remaining layers
      out_ref                                  (out_dim, TB)

    ReLU follows every linear layer except the last (matches the PyTorch
    Sequential with output_activation=None).
    """

    def kernel(*refs):
        in_refs = refs[:num_inputs]
        out_ref = refs[-1]
        p = refs[num_inputs:-1]
        assert len(p) == num_inputs + 1 + 2 * (num_linear - 1)

        # Layer 0 with the concat fused: W0 @ [s; a] = W0s @ s + W0a @ a.
        h = jnp.dot(p[0][...], in_refs[0][...],
                    preferred_element_type=jnp.float32)
        for j in range(1, num_inputs):
            h = h + jnp.dot(p[j][...], in_refs[j][...],
                            preferred_element_type=jnp.float32)
        h = h + p[num_inputs][...]
        if num_linear > 1:
            h = jnp.maximum(h, 0.0)

        idx = num_inputs + 1
        for i in range(1, num_linear):
            w = p[idx][...]
            b = p[idx + 1][...]
            idx += 2
            h = jnp.dot(w, h, preferred_element_type=jnp.float32) + b
            if i < num_linear - 1:
                h = jnp.maximum(h, 0.0)

        out_ref[...] = h.astype(out_ref.dtype)

    return kernel


def value_network_forward(states, actions, params, *, multihead_output=False,
                          max_batch_tile=512):
    """Fused MLP forward.

    states:  (B, state_dim) f32
    actions: (B, action_dim) f32 or None (multihead_output=True)
    params:  list of (W, b) with W: (out, in)  [PyTorch layout], b: (out, 1)
    Returns (B, out_dim) f32, matching ValueNetwork.forward.
    """
    if multihead_output:
        inputs = [states]
    else:
        if actions is None:
            raise ValueError("action embeddings must be passed when multihead=False")
        inputs = [states, actions]

    batch = states.shape[0]
    out_dim = params[-1][0].shape[0]
    num_linear = len(params)
    num_inputs = len(inputs)

    # Batch tile (batch maps to lanes). Small batches: one full block.
    if batch <= max_batch_tile:
        tb = batch
        padded_batch = batch
    else:
        tb = max_batch_tile
        padded_batch = pl.cdiv(batch, tb) * tb
    grid = (padded_batch // tb,)

    # Transposed (and zero-padded along batch) inputs: (features, padded_B).
    inputs_t = []
    for x in inputs:
        x_t = jnp.transpose(x.astype(jnp.float32))
        if padded_batch != batch:
            x_t = jnp.pad(x_t, ((0, 0), (0, padded_batch - batch)))
        inputs_t.append(x_t)

    # Flatten params; split the first-layer weight across the fused-concat inputs.
    w0, b0 = params[0]
    w0_splits = []
    off = 0
    for x in inputs:
        d = x.shape[1]
        w0_splits.append(w0[:, off:off + d])
        off += d
    flat_params = list(w0_splits) + [b0]
    for w, b in params[1:]:
        flat_params.append(w)
        flat_params.append(b)

    # Batch-tiled specs for activations / output; constant-index (resident)
    # full-array specs for every weight and bias.
    in_specs = (
        [pl.BlockSpec((x_t.shape[0], tb), lambda i: (0, i)) for x_t in inputs_t]
        + [pl.BlockSpec(p.shape, lambda i: (0, 0)) for p in flat_params]
    )
    out_specs = pl.BlockSpec((out_dim, tb), lambda i: (0, i))

    # VMEM budget: double-buffered IO tiles + resident params + activation
    # headroom, clamped well under v7x's 64 MiB physical VMEM.
    param_bytes = sum(int(p.size) * p.dtype.itemsize for p in flat_params)
    io_cols = sum(x_t.shape[0] for x_t in inputs_t) + out_dim
    max_width = max(int(w.shape[0]) for w, _ in params)
    vmem_bytes = (2 * 2 * tb * io_cols * 4      # double-buffered in/out tiles
                  + 4 * tb * max_width * 4      # activation headroom
                  + param_bytes
                  + (4 << 20))                  # slack
    vmem_bytes = int(min(max(vmem_bytes, 16 << 20), 48 << 20))

    flops = 2 * batch * sum(int(w.shape[0]) * int(w.shape[1]) for w, _ in params)
    bytes_accessed = 4 * batch * io_cols + param_bytes
    cost = pl.CostEstimate(flops=flops, transcendentals=0,
                           bytes_accessed=int(bytes_accessed))

    out_t = pl.pallas_call(
        _make_mlp_kernel(num_inputs, num_linear),
        out_shape=jax.ShapeDtypeStruct((out_dim, padded_batch), jnp.float32),
        grid=grid,
        in_specs=in_specs,
        out_specs=out_specs,
        compiler_params=pltpu.CompilerParams(
            dimension_semantics=("parallel",),
            vmem_limit_bytes=vmem_bytes),
        cost_estimate=cost,
    )(*inputs_t, *flat_params)

    # Drop batch padding, return PyTorch-style (B, out_dim).
    return jnp.transpose(out_t[:, :batch])


def _xavier_uniform(key, fan_out, fan_in):
    limit = (6.0 / (fan_in + fan_out)) ** 0.5
    return jax.random.uniform(
        key, (fan_out, fan_in), jnp.float32, minval=-limit, maxval=limit)


def init_value_network_params(key, num_layers, state_dim, action_dim, hidden_dim,
                              multihead_output=False):
    """Synthetic init mirroring ValueNetwork.init_weights: xavier_uniform for
    weight matrices, normal fallback for 1-D biases. Weights stored (out, in),
    biases (out, 1)."""
    input_size = state_dim if multihead_output else state_dim + action_dim
    output_size = action_dim if multihead_output else 1

    dims = [input_size, hidden_dim]
    for _ in range(num_layers):
        dims.append(hidden_dim)
    dims.append(output_size)

    params = []
    for i in range(len(dims) - 1):
        key, kw, kb = jax.random.split(key, 3)
        w = _xavier_uniform(kw, dims[i + 1], dims[i])        # (out, in)
        b = jax.random.normal(kb, (dims[i + 1], 1), jnp.float32)
        params.append((w, b))
    return params


def reference_forward(states, actions, params, multihead_output=False):
    if multihead_output:
        h = states
    else:
        h = jnp.concatenate([states, actions], axis=1)
    for i, (w, b) in enumerate(params):
        h = h @ w.T + b.T
        if i < len(params) - 1:
            h = jnp.maximum(h, 0.0)
    return h


if __name__ == "__main__":
    # Small, module-consistent shapes.
    batch = 8
    state_dim = 6
    action_dim = 2
    hidden_dim = 32
    num_layers = 2

    key = jax.random.PRNGKey(0)
    key, ks, ka, kp, kp_mh = jax.random.split(key, 5)

    states = jax.random.normal(ks, (batch, state_dim), jnp.float32)
    actions = jax.random.normal(ka, (batch, action_dim), jnp.float32)

    # Standard head: concat(states, actions) -> scalar per row (fused in-kernel).
    params = init_value_network_params(
        kp, num_layers, state_dim, action_dim, hidden_dim,
        multihead_output=False)
    out = value_network_forward(states, actions, params, multihead_output=False)
    out = jax.block_until_ready(out)
    ref = reference_forward(states, actions, params, multihead_output=False)
    assert out.shape == (batch, 1)
    assert jnp.allclose(out, ref, atol=1e-5, rtol=1e-5), "mismatch (standard head)"

    # Multihead variant: states only -> action_dim outputs.
    params_mh = init_value_network_params(
        kp_mh, num_layers, state_dim, action_dim, hidden_dim,
        multihead_output=True)
    out_mh = value_network_forward(states, None, params_mh, multihead_output=True)
    out_mh = jax.block_until_ready(out_mh)
    ref_mh = reference_forward(states, None, params_mh, multihead_output=True)
    assert out_mh.shape == (batch, action_dim)
    assert jnp.allclose(out_mh, ref_mh, atol=1e-5, rtol=1e-5), "mismatch (multihead)"

    print("KERNEL_OK")
</pallas_src>

<mosaic_0001>
module attributes {stable_mosaic.version = 11 : i64} {
  func.func @kernel(%arg0: i32, %arg1: memref<6x8xf32, #tpu.memory_space<vmem>>, %arg2: memref<2x8xf32, #tpu.memory_space<vmem>>, %arg3: memref<32x6xf32, #tpu.memory_space<vmem>>, %arg4: memref<32x2xf32, #tpu.memory_space<vmem>>, %arg5: memref<32x1xf32, #tpu.memory_space<vmem>>, %arg6: memref<32x32xf32, #tpu.memory_space<vmem>>, %arg7: memref<32x1xf32, #tpu.memory_space<vmem>>, %arg8: memref<32x32xf32, #tpu.memory_space<vmem>>, %arg9: memref<32x1xf32, #tpu.memory_space<vmem>>, %arg10: memref<1x32xf32, #tpu.memory_space<vmem>>, %arg11: memref<1x1xf32, #tpu.memory_space<vmem>>, %arg12: memref<1x8xf32, #tpu.memory_space<vmem>>) attributes {dimension_semantics = [#tpu.dimension_semantics<parallel>], iteration_bounds = array<i64: 1>, scalar_prefetch = 0 : i64, scratch_operands = 0 : i64, tpu.core_type = #tpu.core_type<tc>, window_params = [{transform_indices = @transform_0, window_bounds = array<i64: 6, 8>}, {transform_indices = @transform_1, window_bounds = array<i64: 2, 8>}, {pipeline_mode = #tpu.pipeline_mode<synchronous>, transform_indices = @transform_2, window_bounds = array<i64: 32, 6>}, {pipeline_mode = #tpu.pipeline_mode<synchronous>, transform_indices = @transform_3, window_bounds = array<i64: 32, 2>}, {pipeline_mode = #tpu.pipeline_mode<synchronous>, transform_indices = @transform_4, window_bounds = array<i64: 32, 1>}, {pipeline_mode = #tpu.pipeline_mode<synchronous>, transform_indices = @transform_5, window_bounds = array<i64: 32, 32>}, {pipeline_mode = #tpu.pipeline_mode<synchronous>, transform_indices = @transform_6, window_bounds = array<i64: 32, 1>}, {pipeline_mode = #tpu.pipeline_mode<synchronous>, transform_indices = @transform_7, window_bounds = array<i64: 32, 32>}, {pipeline_mode = #tpu.pipeline_mode<synchronous>, transform_indices = @transform_8, window_bounds = array<i64: 32, 1>}, {pipeline_mode = #tpu.pipeline_mode<synchronous>, transform_indices = @transform_9, window_bounds = array<i64: 1, 32>}, {pipeline_mode = #tpu.pipeline_mode<synchronous>, transform_indices = @transform_10, window_bounds = array<i64: 1, 1>}, {transform_indices = @transform_11, window_bounds = array<i64: 1, 8>}]} {
    %c0 = arith.constant 0 : index
    %c0_0 = arith.constant 0 : index
    %0 = vector.load %arg3[%c0, %c0_0] : memref<32x6xf32, #tpu.memory_space<vmem>>, vector<32x6xf32>
    %c0_1 = arith.constant 0 : index
    %c0_2 = arith.constant 0 : index
    %1 = vector.load %arg1[%c0_1, %c0_2] : memref<6x8xf32, #tpu.memory_space<vmem>>, vector<6x8xf32>
    %cst = arith.constant dense<0.000000e+00> : vector<32x8xf32>
    %2 = tpu.matmul %0, %1, %cst {dimension_numbers = #tpu.dot_dimension_numbers<[1], [0], [0], [1], [0, 0, 1, 1], [], []>} : vector<32x6xf32>, vector<6x8xf32>, vector<32x8xf32> -> vector<32x8xf32>
    %c0_3 = arith.constant 0 : index
    %c0_4 = arith.constant 0 : index
    %3 = vector.load %arg4[%c0_3, %c0_4] : memref<32x2xf32, #tpu.memory_space<vmem>>, vector<32x2xf32>
    %c0_5 = arith.constant 0 : index
    %c0_6 = arith.constant 0 : index
    %4 = vector.load %arg2[%c0_5, %c0_6] : memref<2x8xf32, #tpu.memory_space<vmem>>, vector<2x8xf32>
    %cst_7 = arith.constant dense<0.000000e+00> : vector<32x8xf32>
    %5 = tpu.matmul %3, %4, %cst_7 {dimension_numbers = #tpu.dot_dimension_numbers<[1], [0], [0], [1], [0, 0, 1, 1], [], []>} : vector<32x2xf32>, vector<2x8xf32>, vector<32x8xf32> -> vector<32x8xf32>
    %6 = arith.addf %2, %5 : vector<32x8xf32>
    %c0_8 = arith.constant 0 : index
    %c0_9 = arith.constant 0 : index
    %7 = vector.load %arg5[%c0_8, %c0_9] : memref<32x1xf32, #tpu.memory_space<vmem>>, vector<32x1xf32>
    %8 = vector.broadcast %7 : vector<32x1xf32> to vector<32x8xf32>
    %9 = arith.addf %6, %8 : vector<32x8xf32>
    %cst_10 = arith.constant 0.000000e+00 : f32
    %10 = vector.broadcast %cst_10 : f32 to vector<32x8xf32>
    %11 = arith.maximumf %9, %10 : vector<32x8xf32>
    %c0_11 = arith.constant 0 : index
    %c0_12 = arith.constant 0 : index
    %12 = vector.load %arg6[%c0_11, %c0_12] : memref<32x32xf32, #tpu.memory_space<vmem>>, vector<32x32xf32>
    %c0_13 = arith.constant 0 : index
    %c0_14 = arith.constant 0 : index
    %13 = vector.load %arg7[%c0_13, %c0_14] : memref<32x1xf32, #tpu.memory_space<vmem>>, vector<32x1xf32>
    %cst_15 = arith.constant dense<0.000000e+00> : vector<32x8xf32>
    %14 = tpu.matmul %12, %11, %cst_15 {dimension_numbers = #tpu.dot_dimension_numbers<[1], [0], [0], [1], [0, 0, 1, 1], [], []>} : vector<32x32xf32>, vector<32x8xf32>, vector<32x8xf32> -> vector<32x8xf32>
    %15 = vector.broadcast %13 : vector<32x1xf32> to vector<32x8xf32>
    %16 = arith.addf %14, %15 : vector<32x8xf32>
    %cst_16 = arith.constant 0.000000e+00 : f32
    %17 = vector.broadcast %cst_16 : f32 to vector<32x8xf32>
    %18 = arith.maximumf %16, %17 : vector<32x8xf32>
    %c0_17 = arith.constant 0 : index
    %c0_18 = arith.constant 0 : index
    %19 = vector.load %arg8[%c0_17, %c0_18] : memref<32x32xf32, #tpu.memory_space<vmem>>, vector<32x32xf32>
    %c0_19 = arith.constant 0 : index
    %c0_20 = arith.constant 0 : index
    %20 = vector.load %arg9[%c0_19, %c0_20] : memref<32x1xf32, #tpu.memory_space<vmem>>, vector<32x1xf32>
    %cst_21 = arith.constant dense<0.000000e+00> : vector<32x8xf32>
    %21 = tpu.matmul %19, %18, %cst_21 {dimension_numbers = #tpu.dot_dimension_numbers<[1], [0], [0], [1], [0, 0, 1, 1], [], []>} : vector<32x32xf32>, vector<32x8xf32>, vector<32x8xf32> -> vector<32x8xf32>
    %22 = vector.broadcast %20 : vector<32x1xf32> to vector<32x8xf32>
    %23 = arith.addf %21, %22 : vector<32x8xf32>
    %cst_22 = arith.constant 0.000000e+00 : f32
    %24 = vector.broadcast %cst_22 : f32 to vector<32x8xf32>
    %25 = arith.maximumf %23, %24 : vector<32x8xf32>
    %c0_23 = arith.constant 0 : index
    %c0_24 = arith.constant 0 : index
    %26 = vector.load %arg10[%c0_23, %c0_24] : memref<1x32xf32, #tpu.memory_space<vmem>>, vector<1x32xf32>
    %c0_25 = arith.constant 0 : index
    %c0_26 = arith.constant 0 : index
    %27 = vector.load %arg11[%c0_25, %c0_26] : memref<1x1xf32, #tpu.memory_space<vmem>>, vector<1x1xf32>
    %cst_27 = arith.constant dense<0.000000e+00> : vector<1x8xf32>
    %28 = tpu.matmul %26, %25, %cst_27 {dimension_numbers = #tpu.dot_dimension_numbers<[1], [0], [0], [1], [0, 0, 1, 1], [], []>} : vector<1x32xf32>, vector<32x8xf32>, vector<1x8xf32> -> vector<1x8xf32>
    %29 = vector.broadcast %27 : vector<1x1xf32> to vector<1x8xf32>
    %30 = arith.addf %28, %29 : vector<1x8xf32>
    %c0_28 = arith.constant 0 : index
    %c0_29 = arith.constant 0 : index
    %31 = vector.load %arg12[%c0_28, %c0_29] : memref<1x8xf32, #tpu.memory_space<vmem>>, vector<1x8xf32>
    tpu.vector_store %arg12[%c0_28, %c0_29], %30 {strides = array<i32>} : memref<1x8xf32, #tpu.memory_space<vmem>>, vector<1x8xf32>,
    return
  }
  func.func @transform_0(%arg0: i32) -> (i32, i32) {
    %c0_i32 = arith.constant 0 : i32
    %c0_i32_0 = arith.constant 0 : i32
    return %c0_i32, %arg0 : i32, i32
  }
  func.func @transform_1(%arg0: i32) -> (i32, i32) {
    %c0_i32 = arith.constant 0 : i32
    %c0_i32_0 = arith.constant 0 : i32
    return %c0_i32, %arg0 : i32, i32
  }
  func.func @transform_2(%arg0: i32) -> (i32, i32) {
    %c0_i32 = arith.constant 0 : i32
    %c0_i32_0 = arith.constant 0 : i32
    %c0_i32_1 = arith.constant 0 : i32
    return %c0_i32, %c0_i32_0 : i32, i32
  }
  func.func @transform_3(%arg0: i32) -> (i32, i32) {
    %c0_i32 = arith.constant 0 : i32
    %c0_i32_0 = arith.constant 0 : i32
    %c0_i32_1 = arith.constant 0 : i32
    return %c0_i32, %c0_i32_0 : i32, i32
  }
  func.func @transform_4(%arg0: i32) -> (i32, i32) {
    %c0_i32 = arith.constant 0 : i32
    %c0_i32_0 = arith.constant 0 : i32
    %c0_i32_1 = arith.constant 0 : i32
    return %c0_i32, %c0_i32_0 : i32, i32
  }
  func.func @transform_5(%arg0: i32) -> (i32, i32) {
    %c0_i32 = arith.constant 0 : i32
    %c0_i32_0 = arith.constant 0 : i32
    %c0_i32_1 = arith.constant 0 : i32
    return %c0_i32, %c0_i32_0 : i32, i32
  }
  func.func @transform_6(%arg0: i32) -> (i32, i32) {
    %c0_i32 = arith.constant 0 : i32
    %c0_i32_0 = arith.constant 0 : i32
    %c0_i32_1 = arith.constant 0 : i32
    return %c0_i32, %c0_i32_0 : i32, i32
  }
  func.func @transform_7(%arg0: i32) -> (i32, i32) {
    %c0_i32 = arith.constant 0 : i32
    %c0_i32_0 = arith.constant 0 : i32
    %c0_i32_1 = arith.constant 0 : i32
    return %c0_i32, %c0_i32_0 : i32, i32
  }
  func.func @transform_8(%arg0: i32) -> (i32, i32) {
    %c0_i32 = arith.constant 0 : i32
    %c0_i32_0 = arith.constant 0 : i32
    %c0_i32_1 = arith.constant 0 : i32
    return %c0_i32, %c0_i32_0 : i32, i32
  }
  func.func @transform_9(%arg0: i32) -> (i32, i32) {
    %c0_i32 = arith.constant 0 : i32
    %c0_i32_0 = arith.constant 0 : i32
    %c0_i32_1 = arith.constant 0 : i32
    return %c0_i32, %c0_i32_0 : i32, i32
  }
  func.func @transform_10(%arg0: i32) -> (i32, i32) {
    %c0_i32 = arith.constant 0 : i32
    %c0_i32_0 = arith.constant 0 : i32
    %c0_i32_1 = arith.constant 0 : i32
    return %c0_i32, %c0_i32_0 : i32, i32
  }
  func.func @transform_11(%arg0: i32) -> (i32, i32) {
    %c0_i32 = arith.constant 0 : i32
    %c0_i32_0 = arith.constant 0 : i32
    return %c0_i32, %arg0 : i32, i32
  }
}

</mosaic_0001>

<llo_original>
// kernel: tpu_custom_call.1
$region0: #{tpu_custom_call.1}
  #allocation0 [shape = 'u32[]', space=smem, size = 0x4, offset = 0x4, fixed_abs, tag = 'smem constant byte address 0x4 - core index']
  #allocation1 [shape = 'u32[72,128]{1,0:T(1,128)}', space=vmem, size = 0x9000, scoped, tag = 'internal scratch']
  #allocation2 [shape = 'f32[1,1]{1,0:T(1,128)S(1)}', space=vmem, size = 0x200, scoped, tag = 'scoped memory for tpu_custom_call.1']
  %s0 = inlined_call_operand.vmem [shape: f32[6,8], index: 0, kind: input, shape index: {}]
  %s1 = inlined_call_operand.vmem [shape: f32[2,8], index: 1, kind: input, shape index: {}]
  %s2 = inlined_call_operand.vmem [shape: f32[32,6], index: 2, kind: input, shape index: {}]
  %s3 = inlined_call_operand.vmem [shape: f32[32,2], index: 3, kind: input, shape index: {}]
  %s4 = inlined_call_operand.vmem [shape: f32[32,1], index: 4, kind: input, shape index: {}]
  %s5 = inlined_call_operand.vmem [shape: f32[32,32], index: 5, kind: input, shape index: {}]
  %s6 = inlined_call_operand.vmem [shape: f32[32,1], index: 6, kind: input, shape index: {}]
  %s7 = inlined_call_operand.vmem [shape: f32[32,32], index: 7, kind: input, shape index: {}]
  %s8 = inlined_call_operand.vmem [shape: f32[32,1], index: 8, kind: input, shape index: {}]
  %s9 = inlined_call_operand.vmem [shape: f32[1,32], index: 9, kind: input, shape index: {}]
  %s10 = inlined_call_operand.<no memory space> [shape: f32[1,1], index: 10, kind: input, shape index: {}]
  %s11 = inlined_call_operand.hbm [shape: f32[1,8], index: 11, kind: output, shape index: {}]
  %s12 = sld [smem:[#allocation0]]
  $region54: #{tpu_custom_call.1} parent=0
    _
  %s14 = ssub.s32 1, %s12
  %s15 = scalar_select 0, %s14, %s12
  %v16 = vstv %s10
  %17 = vst [vmem:[#allocation2] sm:$0x1] %v16
  $region1: #{tpu_custom_call.1} parent=0
    #allocation3 [shape = 'u8[512]{0}', space=vmem, size = 0x400, scoped, tag = 'output window, operand 0, single buffered']
    #allocation4 [shape = 's32[1]{0}', space=sflag, size = 0x4, scoped, tag = 'scoped memory for tpu_custom_call.1']
    %18 = vsyncpa [#allocation4], 0
    // Predicated region
    $region2: #{tpu_custom_call.1} parent=1 // pred_check
      _
    $region3: #{tpu_custom_call.1} parent=1 // pred_check_branch
      %20 = sbr.rel (0) target = $region5
    $region4: #{tpu_custom_call.1} parent=1 // pred_region
      _
    $region5: #{tpu_custom_call.1} parent=1 // pred_fallthru
      _
    // Predicated region
    $region6: #{tpu_custom_call.1} parent=1 // pred_check
      _
    $region7: #{tpu_custom_call.1} parent=1 // pred_check_branch
      %22 = sbr.rel (0) target = $region9
    $region8: #{tpu_custom_call.1} parent=1 // pred_region
      _
    $region9: #{tpu_custom_call.1} parent=1 // pred_fallthru
      _
    // Predicated region
    $region10: #{tpu_custom_call.1} parent=1 // pred_check
      _
    $region11: #{tpu_custom_call.1} parent=1 // pred_check_branch
      %24 = sbr.rel (0) target = $region13
    $region12: #{tpu_custom_call.1} parent=1 // pred_region
      _
    $region13: #{tpu_custom_call.1} parent=1 // pred_fallthru
      _
    // Predicated region
    $region14: #{tpu_custom_call.1} parent=1 // pred_check
      _
    $region15: #{tpu_custom_call.1} parent=1 // pred_check_branch
      %26 = sbr.rel (0) target = $region17
    $region16: #{tpu_custom_call.1} parent=1 // pred_region
      _
    $region17: #{tpu_custom_call.1} parent=1 // pred_fallthru
      _
    // Predicated region
    $region18: #{tpu_custom_call.1} parent=1 // pred_check
      _
    $region19: #{tpu_custom_call.1} parent=1 // pred_check_branch
      %28 = sbr.rel (0) target = $region21
    $region20: #{tpu_custom_call.1} parent=1 // pred_region
      _
    $region21: #{tpu_custom_call.1} parent=1 // pred_fallthru
      _
    // Predicated region
    $region22: #{tpu_custom_call.1} parent=1 // pred_check
      _
    $region23: #{tpu_custom_call.1} parent=1 // pred_check_branch
      %30 = sbr.rel (0) target = $region25
    $region24: #{tpu_custom_call.1} parent=1 // pred_region
      _
    $region25: #{tpu_custom_call.1} parent=1 // pred_fallthru
      _
    // Predicated region
    $region26: #{tpu_custom_call.1} parent=1 // pred_check
      _
    $region27: #{tpu_custom_call.1} parent=1 // pred_check_branch
      %32 = sbr.rel (0) target = $region29
    $region28: #{tpu_custom_call.1} parent=1 // pred_region
      _
    $region29: #{tpu_custom_call.1} parent=1 // pred_fallthru
      _
    // Predicated region
    $region30: #{tpu_custom_call.1} parent=1 // pred_check
      _
    $region31: #{tpu_custom_call.1} parent=1 // pred_check_branch
      %34 = sbr.rel (0) target = $region33
    $region32: #{tpu_custom_call.1} parent=1 // pred_region
      _
    $region33: #{tpu_custom_call.1} parent=1 // pred_fallthru
      _
    // Predicated region
    $region34: #{tpu_custom_call.1} parent=1 // pred_check
      _
    $region35: #{tpu_custom_call.1} parent=1 // pred_check_branch
      %36 = sbr.rel (0) target = $region37
    $region36: #{tpu_custom_call.1} parent=1 // pred_region
      _
    $region37: #{tpu_custom_call.1} parent=1 // pred_fallthru
      _
    // Predicated region
    $region38: #{tpu_custom_call.1} parent=1 // pred_check
      _
    $region39: #{tpu_custom_call.1} parent=1 // pred_check_branch
      %38 = sbr.rel (0) target = $region41
    $region40: #{tpu_custom_call.1} parent=1 // pred_region
      _
    $region41: #{tpu_custom_call.1} parent=1 // pred_fallthru
      _
    // Predicated region
    $region42: #{tpu_custom_call.1} parent=1 // pred_check
      _
    $region43: #{tpu_custom_call.1} parent=1 // pred_check_branch
      %40 = sbr.rel (0) target = $region45
    $region44: #{tpu_custom_call.1} parent=1 // pred_region
      _
    $region45: #{tpu_custom_call.1} parent=1 // pred_fallthru
      _
    %v41 = vld [vmem:[%s2] sm:$0xff]
    %v42 = vld [vmem:[%s2 + $0x8] sm:$0xff]
    %v43 = vld [vmem:[%s2 + $0x10] sm:$0xff]
    %v44 = vld [vmem:[%s2 + $0x18] sm:$0xff]
    %v45 = vld [vmem:[%s0] sm:$0x3f]
    %v46 = vld [vmem:[%s3] sm:$0xff]
    %v47 = vld [vmem:[%s3 + $0x8] sm:$0xff]
    %v48 = vld [vmem:[%s3 + $0x10] sm:$0xff]
    %v49 = vld [vmem:[%s3 + $0x18] sm:$0xff]
    %v50 = vld [vmem:[%s1] sm:$0x3]
    %vm51 = vcmask 15360
    %v53 = vsel %vm51, %v46, 0
    %v56 = vsel %vm51, %v47, 0
    %v59 = vsel %vm51, %v48, 0
    %v62 = vsel %vm51, %v49, 0
    %vm64 = vcmask 1041408
    %v66 = vsel %vm64, %v50, 0
    %68 = vmatpush.msra.mxu0 0.0
    %69 = vmatpush.msra.mxu0 0.0
    %70 = vmatpush.msra.mxu0 0.0
    %71 = vmatpush.msra.mxu0 0.0
    %72 = vmatpush.msra.mxu0 0.0
    %73 = vmatpush.msra.mxu0 0.0
    %74 = vmatpush.msra.mxu0 0.0
    %75 = vmatpush.msra.mxu0 0.0
    %76 = vmatpush.msra.mxu0 0.0
    %77 = vmatpush.msra.mxu0 0.0
    %78 = vmatpush.msra.mxu0 0.0
    %79 = vmatpush.msra.mxu0 0.0
    %80 = vmatpush.msra.mxu0 0.0
    %81 = vmatpush.msra.mxu0 0.0
    %82 = vmatpush.msra.mxu0 0.0
    %83 = vmatpush.msra.mxu0 %v66
    %84 = vmatmul.f32.gmra.mxu0 %v53
    %v85 = vpop.f32.mrf.mxu0
    %v86 = vadd.f32 0.0, %v85
    %87 = vmatmul.f32.gmra.mxu0 %v56
    %v88 = vpop.f32.mrf.mxu0
    %v89 = vadd.f32 0.0, %v88
    %90 = vmatmul.f32.gmra.mxu0 %v59
    %v91 = vpop.f32.mrf.mxu0
    %v92 = vadd.f32 0.0, %v91
    %93 = vmatmul.f32.gmra.mxu0 %v62
    %v94 = vpop.f32.mrf.mxu0
    %v95 = vadd.f32 0.0, %v94
    %96 = vdwg.mxu0
    %vm97 = vcmask 48128
    %v99 = vsel %vm97, %v41, 0
    %v102 = vsel %vm97, %v42, 0
    %v105 = vsel %vm97, %v43, 0
    %v108 = vsel %vm97, %v44, 0
    %vm110 = vcmask 1045504
    %v112 = vsel %vm110, %v45, 0
    %114 = vmatpush.msra.mxu0 0.0
    %115 = vmatpush.msra.mxu0 0.0
    %116 = vmatpush.msra.mxu0 0.0
    %117 = vmatpush.msra.mxu0 0.0
    %118 = vmatpush.msra.mxu0 0.0
    %119 = vmatpush.msra.mxu0 0.0
    %120 = vmatpush.msra.mxu0 0.0
    %121 = vmatpush.msra.mxu0 0.0
    %122 = vmatpush.msra.mxu0 0.0
    %123 = vmatpush.msra.mxu0 0.0
    %124 = vmatpush.msra.mxu0 0.0
    %125 = vmatpush.msra.mxu0 0.0
    %126 = vmatpush.msra.mxu0 0.0
    %127 = vmatpush.msra.mxu0 0.0
    %128 = vmatpush.msra.mxu0 0.0
    %129 = vmatpush.msra.mxu0 %v112
    %130 = vmatmul.f32.gmra.mxu0 %v99
    %v131 = vpop.f32.mrf.mxu0
    %v132 = vadd.f32 %v86, %v131
    %133 = vmatmul.f32.gmra.mxu0 %v102
    %v134 = vpop.f32.mrf.mxu0
    %v135 = vadd.f32 %v89, %v134
    %136 = vmatmul.f32.gmra.mxu0 %v105
    %v137 = vpop.f32.mrf.mxu0
    %v138 = vadd.f32 %v92, %v137
    %139 = vmatmul.f32.gmra.mxu0 %v108
    %v140 = vpop.f32.mrf.mxu0
    %v141 = vadd.f32 %v95, %v140
    %142 = vdwg.mxu0
    %v143 = vld [vmem:[%s4] sm:$0xff]
    %v144 = vld [vmem:[%s4 + $0x8] sm:$0xff]
    %v145 = vld [vmem:[%s4 + $0x10] sm:$0xff]
    %v146 = vld [vmem:[%s4 + $0x18] sm:$0xff]
    %148 = vset.pattern.permute.xlu0 0
    %149 = vperm.xlu0 %148, %v143
    %v150 = vpop.permute.xlu0 %149
    %153 = vset.pattern.permute.xlu0 0
    %154 = vperm.xlu0 %153, %v144
    %v155 = vpop.permute.xlu0 %154
    %158 = vset.pattern.permute.xlu0 0
    %159 = vperm.xlu0 %158, %v145
    %v160 = vpop.permute.xlu0 %159
    %163 = vset.pattern.permute.xlu0 0
    %164 = vperm.xlu0 %163, %v146
    %v165 = vpop.permute.xlu0 %164
    %v167 = vadd.f32 %v132, %v150
    %v168 = vadd.f32 %v135, %v155
    %v169 = vadd.f32 %v138, %v160
    %v170 = vadd.f32 %v141, %v165
    %v171 = vmax.f32 %v167, 0.0
    %v172 = vmax.f32 %v168, 0.0
    %v173 = vmax.f32 %v169, 0.0
    %v174 = vmax.f32 %v170, 0.0
    %v175 = vld [vmem:[%s5] sm:$0xff]
    %v176 = vld [vmem:[%s5 + $0x8] sm:$0xff]
    %v177 = vld [vmem:[%s5 + $0x10] sm:$0xff]
    %v178 = vld [vmem:[%s5 + $0x18] sm:$0xff]
    %v179 = vld [vmem:[%s6] sm:$0xff]
    %v180 = vld [vmem:[%s6 + $0x8] sm:$0xff]
    %v181 = vld [vmem:[%s6 + $0x10] sm:$0xff]
    %v182 = vld [vmem:[%s6 + $0x18] sm:$0xff]
    %184 = vset.pattern.permute.xlu0 0
    %185 = vperm.xlu0 %184, %v179
    %v186 = vpop.permute.xlu0 %185
    %189 = vset.pattern.permute.xlu0 0
    %190 = vperm.xlu0 %189, %v180
    %v191 = vpop.permute.xlu0 %190
    %194 = vset.pattern.permute.xlu0 0
    %195 = vperm.xlu0 %194, %v181
    %v196 = vpop.permute.xlu0 %195
    %199 = vset.pattern.permute.xlu0 0
    %200 = vperm.xlu0 %199, %v182
    %v201 = vpop.permute.xlu0 %200
    %vm203 = vcmask 261120
    %v205 = vsel %vm203, %v175, 0
    %v208 = vsel %vm203, %v176, 0
    %v211 = vsel %vm203, %v177, 0
    %v214 = vsel %vm203, %v178, 0
    %216 = vmatpush.msra.mxu0 0.0
    %217 = vmatpush.msra.mxu0 0.0
    %218 = vmatpush.msra.mxu0 0.0
    %219 = vmatpush.msra.mxu0 0.0
    %220 = vmatpush.msra.mxu0 0.0
    %221 = vmatpush.msra.mxu0 0.0
    %222 = vmatpush.msra.mxu0 0.0
    %223 = vmatpush.msra.mxu0 0.0
    %224 = vmatpush.msra.mxu0 0.0
    %225 = vmatpush.msra.mxu0 0.0
    %226 = vmatpush.msra.mxu0 0.0
    %227 = vmatpush.msra.mxu0 0.0
    %228 = vmatpush.msra.mxu0 %v174
    %229 = vmatpush.msra.mxu0 %v173
    %230 = vmatpush.msra.mxu0 %v172
    %231 = vmatpush.msra.mxu0 %v171
    %232 = vmatmul.f32.gmra.mxu0 %v205
    %v233 = vpop.f32.mrf.mxu0
    %v234 = vadd.f32 %v186, %v233
    %235 = vmatmul.f32.gmra.mxu0 %v208
    %v236 = vpop.f32.mrf.mxu0
    %v237 = vadd.f32 %v191, %v236
    %238 = vmatmul.f32.gmra.mxu0 %v211
    %v239 = vpop.f32.mrf.mxu0
    %v240 = vadd.f32 %v196, %v239
    %241 = vmatmul.f32.gmra.mxu0 %v214
    %v242 = vpop.f32.mrf.mxu0
    %v243 = vadd.f32 %v201, %v242
    %244 = vdwg.mxu0
    %v245 = vmax.f32 %v234, 0.0
    %v246 = vmax.f32 %v237, 0.0
    %v247 = vmax.f32 %v240, 0.0
    %v248 = vmax.f32 %v243, 0.0
    %v249 = vld [vmem:[%s7] sm:$0xff]
    %v250 = vld [vmem:[%s7 + $0x8] sm:$0xff]
    %v251 = vld [vmem:[%s7 + $0x10] sm:$0xff]
    %v252 = vld [vmem:[%s7 + $0x18] sm:$0xff]
    %v253 = vld [vmem:[%s8] sm:$0xff]
    %v254 = vld [vmem:[%s8 + $0x8] sm:$0xff]
    %v255 = vld [vmem:[%s8 + $0x10] sm:$0xff]
    %v256 = vld [vmem:[%s8 + $0x18] sm:$0xff]
    %258 = vset.pattern.permute.xlu0 0
    %259 = vperm.xlu0 %258, %v253
    %v260 = vpop.permute.xlu0 %259
    %263 = vset.pattern.permute.xlu0 0
    %264 = vperm.xlu0 %263, %v254
    %v265 = vpop.permute.xlu0 %264
    %268 = vset.pattern.permute.xlu0 0
    %269 = vperm.xlu0 %268, %v255
    %v270 = vpop.permute.xlu0 %269
    %273 = vset.pattern.permute.xlu0 0
    %274 = vperm.xlu0 %273, %v256
    %v275 = vpop.permute.xlu0 %274
    %v278 = vsel %vm203, %v249, 0
    %v281 = vsel %vm203, %v250, 0
    %v284 = vsel %vm203, %v251, 0
    %v287 = vsel %vm203, %v252, 0
    %289 = vmatpush.msra.mxu0 0.0
    %290 = vmatpush.msra.mxu0 0.0
    %291 = vmatpush.msra.mxu0 0.0
    %292 = vmatpush.msra.mxu0 0.0
    %293 = vmatpush.msra.mxu0 0.0
    %294 = vmatpush.msra.mxu0 0.0
    %295 = vmatpush.msra.mxu0 0.0
    %296 = vmatpush.msra.mxu0 0.0
    %297 = vmatpush.msra.mxu0 0.0
    %298 = vmatpush.msra.mxu0 0.0
    %299 = vmatpush.msra.mxu0 0.0
    %300 = vmatpush.msra.mxu0 0.0
    %301 = vmatpush.msra.mxu0 %v248
    %302 = vmatpush.msra.mxu0 %v247
    %303 = vmatpush.msra.mxu0 %v246
    %304 = vmatpush.msra.mxu0 %v245
    %305 = vmatmul.f32.gmra.mxu0 %v278
    %v306 = vpop.f32.mrf.mxu0
    %v307 = vadd.f32 %v260, %v306
    %308 = vmatmul.f32.gmra.mxu0 %v281
    %v309 = vpop.f32.mrf.mxu0
    %v310 = vadd.f32 %v265, %v309
    %311 = vmatmul.f32.gmra.mxu0 %v284
    %v312 = vpop.f32.mrf.mxu0
    %v313 = vadd.f32 %v270, %v312
    %314 = vmatmul.f32.gmra.mxu0 %v287
    %v315 = vpop.f32.mrf.mxu0
    %v316 = vadd.f32 %v275, %v315
    %317 = vdwg.mxu0
    %v318 = vmax.f32 %v307, 0.0
    %v319 = vmax.f32 %v310, 0.0
    %v320 = vmax.f32 %v313, 0.0
    %v321 = vmax.f32 %v316, 0.0
    %v322 = vld [vmem:[%s9] sm:$0x1]
    %v323 = vld [vmem:[#allocation2] sm:$0x1]
    %325 = vset.pattern.permute.xlu0 0
    %326 = vperm.xlu0 %325, %v323
    %v327 = vpop.permute.xlu0 %326
    %v329 = vperm.slane %v327, 0
    %v331 = vsel %vm203, %v322, 0
    %333 = vmatpush.msra.mxu0 0.0
    %334 = vmatpush.msra.mxu0 0.0
    %335 = vmatpush.msra.mxu0 0.0
    %336 = vmatpush.msra.mxu0 0.0
    %337 = vmatpush.msra.mxu0 0.0
    %338 = vmatpush.msra.mxu0 0.0
    %339 = vmatpush.msra.mxu0 0.0
    %340 = vmatpush.msra.mxu0 0.0
    %341 = vmatpush.msra.mxu0 0.0
    %342 = vmatpush.msra.mxu0 0.0
    %343 = vmatpush.msra.mxu0 0.0
    %344 = vmatpush.msra.mxu0 0.0
    %345 = vmatpush.msra.mxu0 %v321
    %346 = vmatpush.msra.mxu0 %v320
    %347 = vmatpush.msra.mxu0 %v319
    %348 = vmatpush.msra.mxu0 %v318
    %349 = vmatmul.f32.gmra.mxu0 %v331
    %v350 = vpop.f32.mrf.mxu0
    %v351 = vadd.f32 %v329, %v350
    %352 = vdwg.mxu0
    %vm353 = vcmask 57344
    %354 = vst.msk [vmem:[#allocation3] sm:$0x1] %vm353, %v351
    // Predicated region
    $region46: #{tpu_custom_call.1} parent=1 // pred_check
      _
    $region47: #{tpu_custom_call.1} parent=1 // pred_check_branch
      %356 = sbr.rel (0) target = $region49
    $region48: #{tpu_custom_call.1} parent=1 // pred_region
      %358 = vsyncadd [#allocation4], 0
      %s360 = sshll.u32 [#allocation3], 4
      %s361 = int_to_ptr.vmem [resolvable:$true] %s360
      %s362 = sshll.u32 %s11, 4
      %s363 = int_to_ptr.hbm [resolvable:$true] %s362
      %365 = dma.vmem_to_hbm [thread:$0]  %s361, 16, %s363, [#allocation4]
    $region49: #{tpu_custom_call.1} parent=1 // pred_fallthru
      _
    // Predicated region
    $region50: #{tpu_custom_call.1} parent=1 // pred_check
      _
    $region51: #{tpu_custom_call.1} parent=1 // pred_check_branch
      %367 = sbr.rel (0) target = $region53
    $region52: #{tpu_custom_call.1} parent=1 // pred_region
      %369 = dma.done [#allocation4], 16
    $region53: #{tpu_custom_call.1} parent=1 // pred_fallthru
      _
    %370 = vsyncpa [#allocation4], 1

</llo_original>
